<compile_context>
chip_gen: v7x
topology: tpu7x:2x2x1
jax: 0.10.0
libtpu: 0.0.40
codegen_flags: <defaults>
</compile_context>

<pallas_src>
import functools

import jax
import jax.numpy as jnp
from jax.experimental import pallas as pl
from jax.experimental.pallas import tpu as pltpu


def _round_up(a, m):
    return (a + m - 1) // m * m


def _mlp_kernel(n_layers, in_pad, hidden, x_ref, w_ref, b_ref, out_ref):
    """Fused MLP forward for one batch tile, entirely in VMEM.

    x_ref   : (TB, in_pad)                               bf16  (pipelined per tile)
    w_ref   : (in_pad + (n_layers-1)*hidden + 1, hidden) bf16  (resident packed weights)
    b_ref   : (n_layers + 1, hidden)                     f32   (resident packed biases)
    out_ref : (1, TB)                                    f32   (lane-dense output tile)
    """
    h = x_ref[...]                                        # bf16 (TB, in_pad)
    row = 0
    in_dim = in_pad
    for i in range(n_layers):
        w = w_ref[row:row + in_dim, :]                    # bf16 (in_dim, hidden), static slice
        b = b_ref[i:i + 1, :]                             # f32  (1, hidden)
        h = jnp.dot(h, w, preferred_element_type=jnp.float32) + b   # MXU, f32 acc
        h = jnp.maximum(h, 0.0)                           # ReLU in f32 (VPU)
        h = h.astype(jnp.bfloat16)                        # bf16 input to next MXU op
        row += in_dim
        in_dim = hidden

    # Output head: weight stored as a single (1, hidden) row. Contract both
    # operands on the hidden axis so the result is already lane-dense (1, TB).
    w_head = w_ref[row:row + 1, :]                        # bf16 (1, hidden)
    b_head = b_ref[n_layers:n_layers + 1, 0:1]            # f32  (1, 1)
    y = jnp.einsum('oh,bh->ob', w_head, h,
                   preferred_element_type=jnp.float32)    # (1, TB) f32
    out_ref[...] = (y + b_head).astype(out_ref.dtype)


def _pack_params(params, input_size, in_pad, hidden, n_layers):
    """Pack weights (bf16) and biases (f32) into two flat VMEM-resident buffers."""
    w_rows = []
    # Layer 0 weight: zero-pad input rows (zeros don't change the result).
    w0 = jnp.zeros((in_pad, hidden), jnp.float32).at[:input_size, :].set(params[0][0])
    w_rows.append(w0)
    for i in range(1, n_layers):
        w_rows.append(params[i][0])                       # (hidden, hidden)
    w_rows.append(params[-1][0].reshape(1, hidden))       # head weight as one row
    w_buf = jnp.concatenate(w_rows, axis=0).astype(jnp.bfloat16)

    b_buf = jnp.zeros((n_layers + 1, hidden), jnp.float32)
    for i in range(n_layers):
        b_buf = b_buf.at[i, :].set(params[i][1].reshape(-1))
    b_buf = b_buf.at[n_layers, 0].set(params[-1][1].reshape(()))
    return w_buf, b_buf


def oligo_mlp_forward(x, params, *, max_block_batch=512):
    """OligoMLP forward with a single batch-tiled Pallas call.

    x:      (batch, input_size) float32
    params: list of (W, b) with W of shape (in, out), b of shape (1, out);
            the last pair is the (hidden -> 1) head.
    Returns: (batch,) float32  (matches torch's .flatten()).
    """
    batch, input_size = x.shape
    hidden = params[0][0].shape[1]
    n_layers = len(params) - 1

    # Lane-align the feature axis.
    in_pad = _round_up(input_size, 128)

    # Batch tile: multiple of 8 (single tile) or of 128 (multi-tile) so every
    # BlockSpec dim is either full-extent or (8,128)-aligned.
    nt = pl.cdiv(batch, max_block_batch)
    if nt == 1:
        tb = _round_up(batch, 8)
    else:
        tb = _round_up(pl.cdiv(batch, nt), 128)
    num_tiles = pl.cdiv(batch, tb)
    batch_pad = num_tiles * tb

    xp = jnp.zeros((batch_pad, in_pad), jnp.bfloat16)
    xp = xp.at[:batch, :input_size].set(x.astype(jnp.bfloat16))

    w_buf, b_buf = _pack_params(params, input_size, in_pad, hidden, n_layers)

    out = pl.pallas_call(
        functools.partial(_mlp_kernel, n_layers, in_pad, hidden),
        out_shape=jax.ShapeDtypeStruct((1, batch_pad), jnp.float32),
        grid=(num_tiles,),
        in_specs=[
            pl.BlockSpec((tb, in_pad), lambda i: (i, 0)),     # x: pipelined batch tile
            pl.BlockSpec(w_buf.shape, lambda i: (0, 0)),      # weights: VMEM-resident
            pl.BlockSpec(b_buf.shape, lambda i: (0, 0)),      # biases:  VMEM-resident
        ],
        out_specs=pl.BlockSpec((1, tb), lambda i: (0, i)),    # lane-dense output
        compiler_params=pltpu.CompilerParams(
            dimension_semantics=("parallel",),
        ),
    )(xp, w_buf, b_buf)

    return out.reshape(-1)[:batch]                            # torch: .flatten()


def init_params(key, input_size, hidden_size, n_layers):
    """Deterministic parameter init (PyTorch Linear-style uniform bounds)."""
    dims = [input_size] + [hidden_size] * n_layers + [1]
    params = []
    for i in range(len(dims) - 1):
        fan_in, fan_out = dims[i], dims[i + 1]
        key, kw, kb = jax.random.split(key, 3)
        bound = 1.0 / jnp.sqrt(fan_in)
        w = jax.random.uniform(kw, (fan_in, fan_out), jnp.float32, -bound, bound)
        b = jax.random.uniform(kb, (1, fan_out), jnp.float32, -bound, bound)
        params.append((w, b))
    return params


def reference_forward_f32(x, params):
    """Pure-JAX f32 reference (module semantics, modulo f64->f32)."""
    h = x
    n_layers = len(params) - 1
    for i in range(n_layers):
        w, b = params[i]
        h = jnp.maximum(h @ w + b, 0.0)
    w, b = params[-1]
    return (h @ w + b).reshape(-1)


def reference_forward_bf16(x, params):
    """Pure-JAX reference matching the kernel's bf16-input / f32-accumulate math."""
    h = x
    n_layers = len(params) - 1
    for i in range(n_layers):
        w, b = params[i]
        h = jnp.dot(h.astype(jnp.bfloat16), w.astype(jnp.bfloat16),
                    preferred_element_type=jnp.float32) + b
        h = jnp.maximum(h, 0.0)
    w, b = params[-1]
    y = jnp.dot(h.astype(jnp.bfloat16), w.astype(jnp.bfloat16),
                preferred_element_type=jnp.float32) + b
    return y.reshape(-1)


if __name__ == "__main__":
    # Small shapes consistent with the module:
    #   input_size = 4*seq_len + 4*seq_len + add_features, seq_len=8, add_features=2
    seq_len = 8
    add_features = 2
    input_size = 4 * seq_len + 4 * seq_len + add_features  # 66
    hidden_size = 32
    n_layers = 2
    batch = 4

    key = jax.random.PRNGKey(0)
    key, kx = jax.random.split(key)
    x = jax.random.normal(kx, (batch, input_size), dtype=jnp.float32)

    params = init_params(key, input_size, hidden_size, n_layers)

    out = oligo_mlp_forward(x, params)
    out = jax.block_until_ready(out)

    ref_bf16 = reference_forward_bf16(x, params)   # same mixed-precision math
    ref_f32 = reference_forward_f32(x, params)     # full-f32 module semantics

    assert out.shape == (batch,)
    assert jnp.allclose(out, ref_bf16, atol=1e-3, rtol=1e-3), (out, ref_bf16)
    assert jnp.allclose(out, ref_f32, atol=5e-2, rtol=5e-2), (out, ref_f32)

    print("KERNEL_OK")
</pallas_src>

<mosaic_0001>
module attributes {stable_mosaic.version = 11 : i64} {
  func.func @_mlp_kernel(%arg0: i32, %arg1: memref<8x128xbf16, #tpu.memory_space<vmem>>, %arg2: memref<161x32xbf16, #tpu.memory_space<vmem>>, %arg3: memref<3x32xf32, #tpu.memory_space<vmem>>, %arg4: memref<1x8xf32, #tpu.memory_space<vmem>>) attributes {dimension_semantics = [#tpu.dimension_semantics<parallel>], iteration_bounds = array<i64: 1>, scalar_prefetch = 0 : i64, scratch_operands = 0 : i64, tpu.core_type = #tpu.core_type<tc>, window_params = [{transform_indices = @transform_0, window_bounds = array<i64: 8, 128>}, {pipeline_mode = #tpu.pipeline_mode<synchronous>, transform_indices = @transform_1, window_bounds = array<i64: 161, 32>}, {pipeline_mode = #tpu.pipeline_mode<synchronous>, transform_indices = @transform_2, window_bounds = array<i64: 3, 32>}, {transform_indices = @transform_3, window_bounds = array<i64: 1, 8>}]} {
    %c0 = arith.constant 0 : index
    %c0_0 = arith.constant 0 : index
    %0 = vector.load %arg1[%c0, %c0_0] : memref<8x128xbf16, #tpu.memory_space<vmem>>, vector<8x128xbf16>
    %c0_1 = arith.constant 0 : index
    %c0_2 = arith.constant 0 : index
    %1 = vector.load %arg2[%c0_1, %c0_2] : memref<161x32xbf16, #tpu.memory_space<vmem>>, vector<128x32xbf16>
    %c0_3 = arith.constant 0 : index
    %c0_4 = arith.constant 0 : index
    %2 = vector.load %arg3[%c0_3, %c0_4] : memref<3x32xf32, #tpu.memory_space<vmem>>, vector<1x32xf32>
    %cst = arith.constant dense<0.000000e+00> : vector<8x32xf32>
    %3 = tpu.matmul %0, %1, %cst {dimension_numbers = #tpu.dot_dimension_numbers<[1], [0], [0], [1], [0, 0, 1, 1], [], []>} : vector<8x128xbf16>, vector<128x32xbf16>, vector<8x32xf32> -> vector<8x32xf32>
    %4 = vector.broadcast %2 : vector<1x32xf32> to vector<8x32xf32>
    %5 = arith.addf %3, %4 : vector<8x32xf32>
    %cst_5 = arith.constant 0.000000e+00 : f32
    %6 = vector.broadcast %cst_5 : f32 to vector<8x32xf32>
    %7 = arith.maximumf %5, %6 : vector<8x32xf32>
    %8 = arith.truncf %7 : vector<8x32xf32> to vector<8x32xbf16>
    %c128 = arith.constant 128 : index
    %c0_6 = arith.constant 0 : index
    %9 = vector.load %arg2[%c128, %c0_6] : memref<161x32xbf16, #tpu.memory_space<vmem>>, vector<32x32xbf16>
    %c1 = arith.constant 1 : index
    %c0_7 = arith.constant 0 : index
    %10 = vector.load %arg3[%c1, %c0_7] : memref<3x32xf32, #tpu.memory_space<vmem>>, vector<1x32xf32>
    %cst_8 = arith.constant dense<0.000000e+00> : vector<8x32xf32>
    %11 = tpu.matmul %8, %9, %cst_8 {dimension_numbers = #tpu.dot_dimension_numbers<[1], [0], [0], [1], [0, 0, 1, 1], [], []>} : vector<8x32xbf16>, vector<32x32xbf16>, vector<8x32xf32> -> vector<8x32xf32>
    %12 = vector.broadcast %10 : vector<1x32xf32> to vector<8x32xf32>
    %13 = arith.addf %11, %12 : vector<8x32xf32>
    %cst_9 = arith.constant 0.000000e+00 : f32
    %14 = vector.broadcast %cst_9 : f32 to vector<8x32xf32>
    %15 = arith.maximumf %13, %14 : vector<8x32xf32>
    %16 = arith.truncf %15 : vector<8x32xf32> to vector<8x32xbf16>
    %c160 = arith.constant 160 : index
    %c0_10 = arith.constant 0 : index
    %17 = vector.load %arg2[%c160, %c0_10] : memref<161x32xbf16, #tpu.memory_space<vmem>>, vector<1x32xbf16>
    %c2 = arith.constant 2 : index
    %c0_11 = arith.constant 0 : index
    %18 = vector.load %arg3[%c2, %c0_11] : memref<3x32xf32, #tpu.memory_space<vmem>>, vector<1x1xf32>
    "tpu.trace_start"() <{level = 10 : i32, message = "oh,bh->ob"}> : () -> ()
    %cst_12 = arith.constant dense<0.000000e+00> : vector<1x8xf32>
    %19 = tpu.matmul %17, %16, %cst_12 {dimension_numbers = #tpu.dot_dimension_numbers<[1], [1], [0], [0], [0, 0, 1, 0], [], []>} : vector<1x32xbf16>, vector<8x32xbf16>, vector<1x8xf32> -> vector<1x8xf32>
    "tpu.trace_stop"() : () -> ()
    %20 = vector.broadcast %18 : vector<1x1xf32> to vector<1x8xf32>
    %21 = arith.addf %19, %20 : vector<1x8xf32>
    %c0_13 = arith.constant 0 : index
    %c0_14 = arith.constant 0 : index
    %22 = vector.load %arg4[%c0_13, %c0_14] : memref<1x8xf32, #tpu.memory_space<vmem>>, vector<1x8xf32>
    tpu.vector_store %arg4[%c0_13, %c0_14], %21 {strides = array<i32>} : memref<1x8xf32, #tpu.memory_space<vmem>>, vector<1x8xf32>,
    return
  }
  func.func @transform_0(%arg0: i32) -> (i32, i32) {
    %c0_i32 = arith.constant 0 : i32
    %c0_i32_0 = arith.constant 0 : i32
    return %arg0, %c0_i32 : i32, i32
  }
  func.func @transform_1(%arg0: i32) -> (i32, i32) {
    %c0_i32 = arith.constant 0 : i32
    %c0_i32_0 = arith.constant 0 : i32
    %c0_i32_1 = arith.constant 0 : i32
    return %c0_i32, %c0_i32_0 : i32, i32
  }
  func.func @transform_2(%arg0: i32) -> (i32, i32) {
    %c0_i32 = arith.constant 0 : i32
    %c0_i32_0 = arith.constant 0 : i32
    %c0_i32_1 = arith.constant 0 : i32
    return %c0_i32, %c0_i32_0 : i32, i32
  }
  func.func @transform_3(%arg0: i32) -> (i32, i32) {
    %c0_i32 = arith.constant 0 : i32
    %c0_i32_0 = arith.constant 0 : i32
    return %c0_i32, %arg0 : i32, i32
  }
}

</mosaic_0001>

<llo_original>
// kernel: tpu_custom_call.1
$region0: #{tpu_custom_call.1}
  #allocation0 [shape = 'u32[]', space=smem, size = 0x4, offset = 0x4, fixed_abs, tag = 'smem constant byte address 0x4 - core index']
  #allocation1 [shape = 'u32[144,128]{1,0:T(1,128)}', space=vmem, size = 0x12000, scoped, tag = 'internal scratch']
  %s0 = inlined_call_operand.vmem [shape: bf16[8,128], index: 0, kind: input, shape index: {}]
  %s1 = inlined_call_operand.vmem [shape: bf16[161,32], index: 1, kind: input, shape index: {}]
  %s2 = inlined_call_operand.vmem [shape: f32[3,32], index: 2, kind: input, shape index: {}]
  %s3 = inlined_call_operand.hbm [shape: f32[1,8], index: 3, kind: output, shape index: {}]
  %s4 = sld [smem:[#allocation0]]
  $region22: #{tpu_custom_call.1} parent=0
    _
  %s6 = ssub.s32 1, %s4
  %s7 = scalar_select 0, %s6, %s4
  $region1: #{tpu_custom_call.1} parent=0
    #allocation2 [shape = 'u8[512]{0}', space=vmem, size = 0x400, scoped, tag = 'output window, operand 0, single buffered']
    #allocation3 [shape = 's32[1]{0}', space=sflag, size = 0x4, scoped, tag = 'scoped memory for tpu_custom_call.1']
    %8 = vsyncpa [#allocation3], 0
    // Predicated region
    $region2: #{tpu_custom_call.1} parent=1 // pred_check
      _
    $region3: #{tpu_custom_call.1} parent=1 // pred_check_branch
      %10 = sbr.rel (0) target = $region5
    $region4: #{tpu_custom_call.1} parent=1 // pred_region
      _
    $region5: #{tpu_custom_call.1} parent=1 // pred_fallthru
      _
    // Predicated region
    $region6: #{tpu_custom_call.1} parent=1 // pred_check
      _
    $region7: #{tpu_custom_call.1} parent=1 // pred_check_branch
      %12 = sbr.rel (0) target = $region9
    $region8: #{tpu_custom_call.1} parent=1 // pred_region
      _
    $region9: #{tpu_custom_call.1} parent=1 // pred_fallthru
      _
    // Predicated region
    $region10: #{tpu_custom_call.1} parent=1 // pred_check
      _
    $region11: #{tpu_custom_call.1} parent=1 // pred_check_branch
      %14 = sbr.rel (0) target = $region13
    $region12: #{tpu_custom_call.1} parent=1 // pred_region
      _
    $region13: #{tpu_custom_call.1} parent=1 // pred_fallthru
      _
    %v16 = vld [vmem:[%s0] sm:$0xf]
    %v17 = vld [vmem:[%s1] sm:$0xf]
    %v18 = vld [vmem:[%s1 + $0x4] sm:$0xf]
    %v19 = vld [vmem:[%s1 + $0x8] sm:$0xf]
    %v20 = vld [vmem:[%s1 + $0xc] sm:$0xf]
    %v21 = vld [vmem:[%s1 + $0x10] sm:$0xf]
    %v22 = vld [vmem:[%s1 + $0x14] sm:$0xf]
    %v23 = vld [vmem:[%s1 + $0x18] sm:$0xf]
    %v24 = vld [vmem:[%s1 + $0x1c] sm:$0xf]
    %v25 = vld [vmem:[%s1 + $0x20] sm:$0xf]
    %v26 = vld [vmem:[%s1 + $0x24] sm:$0xf]
    %v27 = vld [vmem:[%s1 + $0x28] sm:$0xf]
    %v28 = vld [vmem:[%s1 + $0x2c] sm:$0xf]
    %v29 = vld [vmem:[%s1 + $0x30] sm:$0xf]
    %v30 = vld [vmem:[%s1 + $0x34] sm:$0xf]
    %v31 = vld [vmem:[%s1 + $0x38] sm:$0xf]
    %v32 = vld [vmem:[%s1 + $0x3c] sm:$0xf]
    %v33 = vld [vmem:[%s2] sm:$0x1]
    %v34 = vlaneseq
    %v35 = vshrl.u32 %v34, 7
    %v36 = vsub.s32 0, %v35
    %v37 = vrot.slane %v33, %v36
    %v54 = vunpack.c.l.b16 %v17
    %v55 = vunpack.c.l.b16 %v18
    %v56 = vunpack.c.l.b16 %v19
    %v57 = vunpack.c.l.b16 %v20
    %v58 = vunpack.c.l.b16 %v21
    %v59 = vunpack.c.l.b16 %v22
    %v60 = vunpack.c.l.b16 %v23
    %v61 = vunpack.c.l.b16 %v24
    %v62 = vunpack.c.l.b16 %v25
    %v63 = vunpack.c.l.b16 %v26
    %v64 = vunpack.c.l.b16 %v27
    %v65 = vunpack.c.l.b16 %v28
    %v66 = vunpack.c.l.b16 %v29
    %v67 = vunpack.c.l.b16 %v30
    %v68 = vunpack.c.l.b16 %v31
    %v69 = vunpack.c.l.b16 %v32
    %v70 = vpack.c.b16 %v55, %v54
    %v71 = vpack.c.b16 %v57, %v56
    %v72 = vpack.c.b16 %v59, %v58
    %v73 = vpack.c.b16 %v61, %v60
    %v74 = vpack.c.b16 %v63, %v62
    %v75 = vpack.c.b16 %v65, %v64
    %v76 = vpack.c.b16 %v67, %v66
    %v77 = vpack.c.b16 %v69, %v68
    %86 = vmatprep.subr.bf16.mxu0 0
    %87 = vmatpush1.bf16.msra.mxu0 %v70
    %88 = vmatprep.subr.bf16.mxu0 0
    %89 = vmatpush1.bf16.msra.mxu0 %v71
    %90 = vmatprep.subr.bf16.mxu0 0
    %91 = vmatpush1.bf16.msra.mxu0 %v72
    %92 = vmatprep.subr.bf16.mxu0 0
    %93 = vmatpush1.bf16.msra.mxu0 %v73
    %94 = vmatprep.subr.bf16.mxu0 0
    %95 = vmatpush1.bf16.msra.mxu0 %v74
    %96 = vmatprep.subr.bf16.mxu0 0
    %97 = vmatpush1.bf16.msra.mxu0 %v75
    %98 = vmatprep.subr.bf16.mxu0 0
    %99 = vmatpush1.bf16.msra.mxu0 %v76
    %100 = vmatprep.subr.bf16.mxu0 0
    %101 = vmatpush1.bf16.msra.mxu0 %v77
    %102 = vmatprep.subr.bf16.mxu0 0
    %103 = vmatpush1.bf16.msra.mxu0 0
    %104 = vmatprep.subr.bf16.mxu0 0
    %105 = vmatpush1.bf16.msra.mxu0 0
    %106 = vmatprep.subr.bf16.mxu0 0
    %107 = vmatpush1.bf16.msra.mxu0 0
    %108 = vmatprep.subr.bf16.mxu0 0
    %109 = vmatpush1.bf16.msra.mxu0 0
    %110 = vmatprep.subr.bf16.mxu0 0
    %111 = vmatpush1.bf16.msra.mxu0 0
    %112 = vmatprep.subr.bf16.mxu0 0
    %113 = vmatpush1.bf16.msra.mxu0 0
    %114 = vmatprep.subr.bf16.mxu0 0
    %115 = vmatpush1.bf16.msra.mxu0 0
    %116 = vmatprep.subr.bf16.mxu0 0
    %117 = vmatpush1.bf16.msra.mxu0 0
    %118 = vmatprep.mubr.bf16.mxu0 0
    %119 = vmatmul.mubr.bf16.gmra.mrb[0].mxu0 %v16
    %v120 = vpop.f32.mrb[0].mxu0
    %v121 = vadd.f32 %v37, %v120
    %v122 = vpop.f32.mrb[0].mxu0
    %v123 = vpop.f32.mrb[0].mxu0
    %v124 = vpop.f32.mrb[0].mxu0
    %125 = vdwg.mxu0
    %v126 = vmax.f32 %v121, 0.0
    %v127 = vpack.c.bf16 %v126, %v126
    %v128 = vld [vmem:[%s1 + $0x40] sm:$0xf]
    %v129 = vld [vmem:[%s1 + $0x44] sm:$0xf]
    %v130 = vld [vmem:[%s1 + $0x48] sm:$0xf]
    %v131 = vld [vmem:[%s1 + $0x4c] sm:$0xf]
    %v132 = vld [vmem:[%s2 + $0x1] sm:$0x1]
    %v133 = vlaneseq
    %v134 = vshrl.u32 %v133, 7
    %v135 = vsub.s32 0, %v134
    %v136 = vrot.slane %v132, %v135
    %v141 = vunpack.c.l.b16 %v128
    %v142 = vunpack.c.l.b16 %v129
    %v143 = vunpack.c.l.b16 %v130
    %v144 = vunpack.c.l.b16 %v131
    %v145 = vpack.c.b16 %v142, %v141
    %v146 = vpack.c.b16 %v144, %v143
    %vm149 = vcmask 261120
    %v151 = vsel %vm149, %v127, 0
    %153 = vmatprep.subr.bf16.mxu0 0
    %154 = vmatpush1.bf16.msra.mxu0 %v145
    %155 = vmatprep.subr.bf16.mxu0 0
    %156 = vmatpush1.bf16.msra.mxu0 %v146
    %157 = vmatprep.subr.bf16.mxu0 0
    %158 = vmatpush1.bf16.msra.mxu0 0
    %159 = vmatprep.subr.bf16.mxu0 0
    %160 = vmatpush1.bf16.msra.mxu0 0
    %161 = vmatprep.subr.bf16.mxu0 0
    %162 = vmatpush1.bf16.msra.mxu0 0
    %163 = vmatprep.subr.bf16.mxu0 0
    %164 = vmatpush1.bf16.msra.mxu0 0
    %165 = vmatprep.subr.bf16.mxu0 0
    %166 = vmatpush1.bf16.msra.mxu0 0
    %167 = vmatprep.subr.bf16.mxu0 0
    %168 = vmatpush1.bf16.msra.mxu0 0
    %169 = vmatprep.subr.bf16.mxu0 0
    %170 = vmatpush1.bf16.msra.mxu0 0
    %171 = vmatprep.subr.bf16.mxu0 0
    %172 = vmatpush1.bf16.msra.mxu0 0
    %173 = vmatprep.subr.bf16.mxu0 0
    %174 = vmatpush1.bf16.msra.mxu0 0
    %175 = vmatprep.subr.bf16.mxu0 0
    %176 = vmatpush1.bf16.msra.mxu0 0
    %177 = vmatprep.subr.bf16.mxu0 0
    %178 = vmatpush1.bf16.msra.mxu0 0
    %179 = vmatprep.subr.bf16.mxu0 0
    %180 = vmatpush1.bf16.msra.mxu0 0
    %181 = vmatprep.subr.bf16.mxu0 0
    %182 = vmatpush1.bf16.msra.mxu0 0
    %183 = vmatprep.subr.bf16.mxu0 0
    %184 = vmatpush1.bf16.msra.mxu0 0
    %185 = vmatprep.mubr.bf16.mxu0 0
    %186 = vmatmul.mubr.bf16.gmra.mrb[0].mxu0 %v151
    %v187 = vpop.f32.mrb[0].mxu0
    %v188 = vadd.f32 %v136, %v187
    %v189 = vpop.f32.mrb[0].mxu0
    %v190 = vpop.f32.mrb[0].mxu0
    %v191 = vpop.f32.mrb[0].mxu0
    %192 = vdwg.mxu0
    %v193 = vmax.f32 %v188, 0.0
    %v194 = vpack.c.bf16 %v193, %v193
    %v195 = vld [vmem:[%s1 + $0x50] sm:$0x1]
    %v196 = vld [vmem:[%s2 + $0x2] sm:$0x1]
    %198 = vset.pattern.permute.xlu0 0
    %199 = vperm.xlu0 %198, %v196
    %v200 = vpop.permute.xlu0 %199
    %v203 = vsel %vm149, %v195, 0
    %v206 = vsel %vm149, %v194, 0
    %208 = vmatprep.subr.bf16.mxu0 0
    %209 = vmatpush1.bf16.xpose.msra.mxu0 %v206
    %210 = vmatprep.subr.bf16.mxu0 0
    %211 = vmatpush1.bf16.xpose.msra.mxu0 0
    %212 = vmatprep.subr.bf16.mxu0 0
    %213 = vmatpush1.bf16.xpose.msra.mxu0 0
    %214 = vmatprep.subr.bf16.mxu0 0
    %215 = vmatpush1.bf16.xpose.msra.mxu0 0
    %216 = vmatprep.subr.bf16.mxu0 0
    %217 = vmatpush1.bf16.xpose.msra.mxu0 0
    %218 = vmatprep.subr.bf16.mxu0 0
    %219 = vmatpush1.bf16.xpose.msra.mxu0 0
    %220 = vmatprep.subr.bf16.mxu0 0
    %221 = vmatpush1.bf16.xpose.msra.mxu0 0
    %222 = vmatprep.subr.bf16.mxu0 0
    %223 = vmatpush1.bf16.xpose.msra.mxu0 0
    %224 = vmatprep.subr.bf16.mxu0 0
    %225 = vmatpush1.bf16.xpose.msra.mxu0 0
    %226 = vmatprep.subr.bf16.mxu0 0
    %227 = vmatpush1.bf16.xpose.msra.mxu0 0
    %228 = vmatprep.subr.bf16.mxu0 0
    %229 = vmatpush1.bf16.xpose.msra.mxu0 0
    %230 = vmatprep.subr.bf16.mxu0 0
    %231 = vmatpush1.bf16.xpose.msra.mxu0 0
    %232 = vmatprep.subr.bf16.mxu0 0
    %233 = vmatpush1.bf16.xpose.msra.mxu0 0
    %234 = vmatprep.subr.bf16.mxu0 0
    %235 = vmatpush1.bf16.xpose.msra.mxu0 0
    %236 = vmatprep.subr.bf16.mxu0 0
    %237 = vmatpush1.bf16.xpose.msra.mxu0 0
    %238 = vmatprep.subr.bf16.mxu0 0
    %239 = vmatpush1.bf16.xpose.msra.mxu0 0
    %240 = vmatprep.mubr.bf16.mxu0 0
    %241 = vmatmul.mubr.bf16.gmra.mrb[0].mxu0 %v203
    %v242 = vpop.f32.mrb[0].mxu0
    %v243 = vadd.f32 %v200, %v242
    %v244 = vpop.f32.mrb[0].mxu0
    %v245 = vpop.f32.mrb[0].mxu0
    %v246 = vpop.f32.mrb[0].mxu0
    %247 = vdwg.mxu0
    %vm248 = vcmask 57344
    %249 = vst.msk [vmem:[#allocation2] sm:$0x1] %vm248, %v243
    // Predicated region
    $region14: #{tpu_custom_call.1} parent=1 // pred_check
      _
    $region15: #{tpu_custom_call.1} parent=1 // pred_check_branch
      %251 = sbr.rel (0) target = $region17
    $region16: #{tpu_custom_call.1} parent=1 // pred_region
      %s253 = ssub.s32 16, 16
      %254 = vsyncadd [#allocation3], %s253
      %s256 = sshll.u32 [#allocation2], 4
      %s257 = int_to_ptr.vmem [resolvable:$true] %s256
      %259 = dma.vmem_to_hbm [thread:$0]  %s257, 16, %s3, [#allocation3]
    $region17: #{tpu_custom_call.1} parent=1 // pred_fallthru
      _
    // Predicated region
    $region18: #{tpu_custom_call.1} parent=1 // pred_check
      _
    $region19: #{tpu_custom_call.1} parent=1 // pred_check_branch
      %261 = sbr.rel (0) target = $region21
    $region20: #{tpu_custom_call.1} parent=1 // pred_region
      %262 = dma.done [#allocation3], 16
    $region21: #{tpu_custom_call.1} parent=1 // pred_fallthru
      _
    %263 = vsyncpa [#allocation3], 1

</llo_original>
